<compile_context>
chip_gen: v7x
topology: tpu7x:2x2x1
jax: 0.10.0
libtpu: 0.0.40
codegen_flags: <defaults>
</compile_context>

<pallas_src>
import jax
import jax.numpy as jnp
from jax.experimental import pallas as pl
from jax.experimental.pallas import tpu as pltpu


def _round_up(n, m):
    return ((n + m - 1) // m) * m


def _layer_norm(h, gamma, beta, eps=1e-5):
    """PyTorch-style LayerNorm over the last dim (biased variance), in f32."""
    mean = jnp.mean(h, axis=-1, keepdims=True)
    c = h - mean
    var = jnp.mean(c * c, axis=-1, keepdims=True)
    return c * jax.lax.rsqrt(var + eps) * gamma + beta


def cls_decoder_kernel(x_ref, w1_ref, w2_ref, w3_ref, vec_ref, b3_ref, out_ref):
    # x arrives as f32 from HBM; cast to bf16 on the VPU right before the MXU.
    x = x_ref[...].astype(jnp.bfloat16)                               # (Bt, D)

    # Packed per-feature vectors: rows = [b1, g1, be1, b2, g2, be2, 0, 0].
    b1, g1, be1 = vec_ref[0:1, :], vec_ref[1:2, :], vec_ref[2:3, :]
    b2, g2, be2 = vec_ref[3:4, :], vec_ref[4:5, :], vec_ref[5:6, :]

    # Block 1: Linear -> ReLU -> LayerNorm (f32 accumulation + f32 LN math).
    h = jnp.dot(x, w1_ref[...], preferred_element_type=jnp.float32) + b1
    h = jnp.maximum(h, 0.0)
    h = _layer_norm(h, g1, be1)

    # Block 2: Linear -> ReLU -> LayerNorm.
    h = jnp.dot(h.astype(jnp.bfloat16), w2_ref[...],
                preferred_element_type=jnp.float32) + b2
    h = jnp.maximum(h, 0.0)
    h = _layer_norm(h, g2, be2)

    # Output layer: Linear(d_model -> n_cls_padded), lane-dense store.
    out_ref[...] = (jnp.dot(h.astype(jnp.bfloat16), w3_ref[...],
                            preferred_element_type=jnp.float32)
                    + b3_ref[...]).astype(out_ref.dtype)


def cls_decoder(x, params, *, block_b=256, out_dtype=jnp.bfloat16):
    """x: (B, d_model) float32.  params: prepared dict from make_params()."""
    B, D = x.shape
    C = params["n_cls"]
    C_pad = params["b3"].shape[1]

    # ---- batch tiling: multiple of 16, clamp to batch, pad ragged batches ----
    bt = max(16, min(_round_up(block_b, 16), _round_up(B, 16)))
    B_pad = _round_up(B, bt)
    # Keep >= 2 grid steps when possible so both v7x TensorCores get a tile.
    if B_pad // bt == 1 and B >= 32:
        bt = _round_up(pl.cdiv(B, 2), 16)
        B_pad = _round_up(B, bt)
    if B_pad != B:
        x = jnp.pad(x, ((0, B_pad - B), (0, 0)))

    const = lambda i: (0, 0)

    def resident_spec(shape):
        # Weights never re-fetch (constant index_map); for big d_model drop to a
        # single buffer to keep VMEM headroom (irrelevant at small D).
        if D >= 1024:
            return pl.BlockSpec(shape, const, pipeline_mode=pl.Buffered(1))
        return pl.BlockSpec(shape, const)

    in_specs = [
        pl.BlockSpec((bt, D), lambda i: (i, 0)),   # x: batch-tiled, f32
        resident_spec((D, D)),                     # w1 (resident, bf16)
        resident_spec((D, D)),                     # w2 (resident, bf16)
        resident_spec((D, C_pad)),                 # w3 (resident, bf16, padded)
        resident_spec((8, D)),                     # packed b1/g1/be1/b2/g2/be2
        resident_spec((1, C_pad)),                 # b3 (padded)
    ]

    out = pl.pallas_call(
        cls_decoder_kernel,
        out_shape=jax.ShapeDtypeStruct((B_pad, C_pad), out_dtype),
        grid=(B_pad // bt,),
        in_specs=in_specs,
        out_specs=pl.BlockSpec((bt, C_pad), lambda i: (i, 0)),
        compiler_params=pltpu.CompilerParams(
            dimension_semantics=("parallel",)),
    )(x, params["w1"], params["w2"], params["w3"], params["vec"], params["b3"])

    # TODO(synk): if the caller immediately does softmax/argmax, fuse it over
    # the first C lanes instead of paying this slice pass.
    return out[:B, :C]


def make_params(key, d_model, n_cls):
    """Create params already in kernel-ready layout (padded w3/b3, packed vec)."""
    ks = jax.random.split(key, 10)
    f32, bf16 = jnp.float32, jnp.bfloat16
    s = 1.0 / jnp.sqrt(d_model)
    # torch nn.Linear stores weight as (out, in); we store transposed (in, out).
    w1 = jax.random.uniform(ks[0], (d_model, d_model), f32, -s, s).astype(bf16)
    b1 = jax.random.uniform(ks[1], (1, d_model), f32, -s, s)
    w2 = jax.random.uniform(ks[2], (d_model, d_model), f32, -s, s).astype(bf16)
    b2 = jax.random.uniform(ks[3], (1, d_model), f32, -s, s)
    w3 = jax.random.uniform(ks[4], (d_model, n_cls), f32, -s, s).astype(bf16)
    b3 = jax.random.uniform(ks[5], (1, n_cls), f32, -s, s)
    # LayerNorm affine params (randomized slightly so the test exercises them).
    g1 = 1.0 + 0.1 * jax.random.normal(ks[6], (1, d_model), f32)
    be1 = 0.1 * jax.random.normal(ks[7], (1, d_model), f32)
    g2 = 1.0 + 0.1 * jax.random.normal(ks[8], (1, d_model), f32)
    be2 = 0.1 * jax.random.normal(ks[9], (1, d_model), f32)

    # One-time prep (out of the per-call hot path):
    #  * pad w3/b3 to a 128-lane-dense output width
    #  * pack the six (1, d_model) f32 vectors into a single (8, d_model) array
    c_pad = max(128, _round_up(n_cls, 128))
    w3p = jnp.pad(w3, ((0, 0), (0, c_pad - n_cls)))
    b3p = jnp.pad(b3, ((0, 0), (0, c_pad - n_cls)))
    vec = jnp.concatenate(
        [b1, g1, be1, b2, g2, be2, jnp.zeros((2, d_model), f32)], axis=0)
    return dict(w1=w1, w2=w2, w3=w3p, b3=b3p, vec=vec, n_cls=n_cls)


def reference_forward(x, p):
    """Plain-JAX reference mirroring the kernel numerics (bf16 matmuls, f32 acc/LN)."""
    b1, g1, be1 = p["vec"][0:1], p["vec"][1:2], p["vec"][2:3]
    b2, g2, be2 = p["vec"][3:4], p["vec"][4:5], p["vec"][5:6]
    h = jnp.dot(x.astype(jnp.bfloat16), p["w1"],
                preferred_element_type=jnp.float32) + b1
    h = jnp.maximum(h, 0.0)
    h = _layer_norm(h, g1, be1)
    h = jnp.dot(h.astype(jnp.bfloat16), p["w2"],
                preferred_element_type=jnp.float32) + b2
    h = jnp.maximum(h, 0.0)
    h = _layer_norm(h, g2, be2)
    out = jnp.dot(h.astype(jnp.bfloat16), p["w3"],
                  preferred_element_type=jnp.float32) + p["b3"]
    return out[:, :p["n_cls"]]


if __name__ == "__main__":
    B, D_MODEL, N_CLS = 16, 128, 10          # batch, embsize, number of classes

    key = jax.random.PRNGKey(0)
    kx, kp = jax.random.split(key)
    x = jax.random.normal(kx, (B, D_MODEL), jnp.float32)
    params = make_params(kp, d_model=D_MODEL, n_cls=N_CLS)

    out = cls_decoder(x, params)
    out = jax.block_until_ready(out)

    ref = reference_forward(x, params)
    assert out.shape == (B, N_CLS), out.shape
    # Kernel output is bf16; compare in f32 with bf16-appropriate tolerance.
    assert jnp.allclose(out.astype(jnp.float32), ref, rtol=2e-2, atol=2e-2), \
        "mismatch vs reference"

    print("KERNEL_OK")
</pallas_src>

<mosaic_0001>
module attributes {stable_mosaic.version = 11 : i64} {
  func.func @cls_decoder_kernel(%arg0: i32, %arg1: memref<16x128xf32, #tpu.memory_space<vmem>>, %arg2: memref<128x128xbf16, #tpu.memory_space<vmem>>, %arg3: memref<128x128xbf16, #tpu.memory_space<vmem>>, %arg4: memref<128x128xbf16, #tpu.memory_space<vmem>>, %arg5: memref<8x128xf32, #tpu.memory_space<vmem>>, %arg6: memref<1x128xf32, #tpu.memory_space<vmem>>, %arg7: memref<16x128xbf16, #tpu.memory_space<vmem>>) attributes {dimension_semantics = [#tpu.dimension_semantics<parallel>], iteration_bounds = array<i64: 1>, scalar_prefetch = 0 : i64, scratch_operands = 0 : i64, tpu.core_type = #tpu.core_type<tc>, window_params = [{transform_indices = @transform_0, window_bounds = array<i64: 16, 128>}, {pipeline_mode = #tpu.pipeline_mode<synchronous>, transform_indices = @transform_1, window_bounds = array<i64: 128, 128>}, {pipeline_mode = #tpu.pipeline_mode<synchronous>, transform_indices = @transform_2, window_bounds = array<i64: 128, 128>}, {pipeline_mode = #tpu.pipeline_mode<synchronous>, transform_indices = @transform_3, window_bounds = array<i64: 128, 128>}, {pipeline_mode = #tpu.pipeline_mode<synchronous>, transform_indices = @transform_4, window_bounds = array<i64: 8, 128>}, {pipeline_mode = #tpu.pipeline_mode<synchronous>, transform_indices = @transform_5, window_bounds = array<i64: 1, 128>}, {transform_indices = @transform_6, window_bounds = array<i64: 16, 128>}]} {
    %c0 = arith.constant 0 : index
    %c0_0 = arith.constant 0 : index
    %0 = vector.load %arg1[%c0, %c0_0] : memref<16x128xf32, #tpu.memory_space<vmem>>, vector<16x128xf32>
    %1 = arith.truncf %0 : vector<16x128xf32> to vector<16x128xbf16>
    %c0_1 = arith.constant 0 : index
    %c0_2 = arith.constant 0 : index
    %2 = vector.load %arg5[%c0_1, %c0_2] : memref<8x128xf32, #tpu.memory_space<vmem>>, vector<1x128xf32>
    %c1 = arith.constant 1 : index
    %c0_3 = arith.constant 0 : index
    %3 = vector.load %arg5[%c1, %c0_3] : memref<8x128xf32, #tpu.memory_space<vmem>>, vector<1x128xf32>
    %c2 = arith.constant 2 : index
    %c0_4 = arith.constant 0 : index
    %4 = vector.load %arg5[%c2, %c0_4] : memref<8x128xf32, #tpu.memory_space<vmem>>, vector<1x128xf32>
    %c3 = arith.constant 3 : index
    %c0_5 = arith.constant 0 : index
    %5 = vector.load %arg5[%c3, %c0_5] : memref<8x128xf32, #tpu.memory_space<vmem>>, vector<1x128xf32>
    %c4 = arith.constant 4 : index
    %c0_6 = arith.constant 0 : index
    %6 = vector.load %arg5[%c4, %c0_6] : memref<8x128xf32, #tpu.memory_space<vmem>>, vector<1x128xf32>
    %c5 = arith.constant 5 : index
    %c0_7 = arith.constant 0 : index
    %7 = vector.load %arg5[%c5, %c0_7] : memref<8x128xf32, #tpu.memory_space<vmem>>, vector<1x128xf32>
    %c0_8 = arith.constant 0 : index
    %c0_9 = arith.constant 0 : index
    %8 = vector.load %arg2[%c0_8, %c0_9] : memref<128x128xbf16, #tpu.memory_space<vmem>>, vector<128x128xbf16>
    %cst = arith.constant dense<0.000000e+00> : vector<16x128xf32>
    %9 = tpu.matmul %1, %8, %cst {dimension_numbers = #tpu.dot_dimension_numbers<[1], [0], [0], [1], [0, 0, 1, 1], [], []>} : vector<16x128xbf16>, vector<128x128xbf16>, vector<16x128xf32> -> vector<16x128xf32>
    %10 = vector.broadcast %2 : vector<1x128xf32> to vector<16x128xf32>
    %11 = arith.addf %9, %10 : vector<16x128xf32>
    %cst_10 = arith.constant 0.000000e+00 : f32
    %12 = vector.broadcast %cst_10 : f32 to vector<16x128xf32>
    %13 = arith.maximumf %11, %12 : vector<16x128xf32>
    %cst_11 = arith.constant dense<0.000000e+00> : vector<16xf32>
    %14 = vector.multi_reduction <add>, %13, %cst_11 [1] : vector<16x128xf32> to vector<16xf32>
    %15 = vector.shape_cast %14 : vector<16xf32> to vector<16x1xf32>
    %cst_12 = arith.constant 1.280000e+02 : f32
    %16 = vector.broadcast %cst_12 : f32 to vector<16x1xf32>
    %17 = arith.divf %15, %16 : vector<16x1xf32>
    %18 = vector.broadcast %17 : vector<16x1xf32> to vector<16x128xf32>
    %19 = arith.subf %13, %18 : vector<16x128xf32>
    %20 = arith.mulf %19, %19 : vector<16x128xf32>
    %cst_13 = arith.constant dense<0.000000e+00> : vector<16xf32>
    %21 = vector.multi_reduction <add>, %20, %cst_13 [1] : vector<16x128xf32> to vector<16xf32>
    %22 = vector.shape_cast %21 : vector<16xf32> to vector<16x1xf32>
    %cst_14 = arith.constant 1.280000e+02 : f32
    %23 = vector.broadcast %cst_14 : f32 to vector<16x1xf32>
    %24 = arith.divf %22, %23 : vector<16x1xf32>
    %cst_15 = arith.constant 9.99999974E-6 : f32
    %25 = vector.broadcast %cst_15 : f32 to vector<16x1xf32>
    %26 = arith.addf %24, %25 : vector<16x1xf32>
    %27 = math.rsqrt %26 : vector<16x1xf32>
    %28 = vector.broadcast %27 : vector<16x1xf32> to vector<16x128xf32>
    %29 = arith.mulf %19, %28 : vector<16x128xf32>
    %30 = vector.broadcast %3 : vector<1x128xf32> to vector<16x128xf32>
    %31 = arith.mulf %29, %30 : vector<16x128xf32>
    %32 = vector.broadcast %4 : vector<1x128xf32> to vector<16x128xf32>
    %33 = arith.addf %31, %32 : vector<16x128xf32>
    %34 = arith.truncf %33 : vector<16x128xf32> to vector<16x128xbf16>
    %c0_16 = arith.constant 0 : index
    %c0_17 = arith.constant 0 : index
    %35 = vector.load %arg3[%c0_16, %c0_17] : memref<128x128xbf16, #tpu.memory_space<vmem>>, vector<128x128xbf16>
    %cst_18 = arith.constant dense<0.000000e+00> : vector<16x128xf32>
    %36 = tpu.matmul %34, %35, %cst_18 {dimension_numbers = #tpu.dot_dimension_numbers<[1], [0], [0], [1], [0, 0, 1, 1], [], []>} : vector<16x128xbf16>, vector<128x128xbf16>, vector<16x128xf32> -> vector<16x128xf32>
    %37 = vector.broadcast %5 : vector<1x128xf32> to vector<16x128xf32>
    %38 = arith.addf %36, %37 : vector<16x128xf32>
    %cst_19 = arith.constant 0.000000e+00 : f32
    %39 = vector.broadcast %cst_19 : f32 to vector<16x128xf32>
    %40 = arith.maximumf %38, %39 : vector<16x128xf32>
    %cst_20 = arith.constant dense<0.000000e+00> : vector<16xf32>
    %41 = vector.multi_reduction <add>, %40, %cst_20 [1] : vector<16x128xf32> to vector<16xf32>
    %42 = vector.shape_cast %41 : vector<16xf32> to vector<16x1xf32>
    %cst_21 = arith.constant 1.280000e+02 : f32
    %43 = vector.broadcast %cst_21 : f32 to vector<16x1xf32>
    %44 = arith.divf %42, %43 : vector<16x1xf32>
    %45 = vector.broadcast %44 : vector<16x1xf32> to vector<16x128xf32>
    %46 = arith.subf %40, %45 : vector<16x128xf32>
    %47 = arith.mulf %46, %46 : vector<16x128xf32>
    %cst_22 = arith.constant dense<0.000000e+00> : vector<16xf32>
    %48 = vector.multi_reduction <add>, %47, %cst_22 [1] : vector<16x128xf32> to vector<16xf32>
    %49 = vector.shape_cast %48 : vector<16xf32> to vector<16x1xf32>
    %cst_23 = arith.constant 1.280000e+02 : f32
    %50 = vector.broadcast %cst_23 : f32 to vector<16x1xf32>
    %51 = arith.divf %49, %50 : vector<16x1xf32>
    %cst_24 = arith.constant 9.99999974E-6 : f32
    %52 = vector.broadcast %cst_24 : f32 to vector<16x1xf32>
    %53 = arith.addf %51, %52 : vector<16x1xf32>
    %54 = math.rsqrt %53 : vector<16x1xf32>
    %55 = vector.broadcast %54 : vector<16x1xf32> to vector<16x128xf32>
    %56 = arith.mulf %46, %55 : vector<16x128xf32>
    %57 = vector.broadcast %6 : vector<1x128xf32> to vector<16x128xf32>
    %58 = arith.mulf %56, %57 : vector<16x128xf32>
    %59 = vector.broadcast %7 : vector<1x128xf32> to vector<16x128xf32>
    %60 = arith.addf %58, %59 : vector<16x128xf32>
    %61 = arith.truncf %60 : vector<16x128xf32> to vector<16x128xbf16>
    %c0_25 = arith.constant 0 : index
    %c0_26 = arith.constant 0 : index
    %62 = vector.load %arg4[%c0_25, %c0_26] : memref<128x128xbf16, #tpu.memory_space<vmem>>, vector<128x128xbf16>
    %cst_27 = arith.constant dense<0.000000e+00> : vector<16x128xf32>
    %63 = tpu.matmul %61, %62, %cst_27 {dimension_numbers = #tpu.dot_dimension_numbers<[1], [0], [0], [1], [0, 0, 1, 1], [], []>} : vector<16x128xbf16>, vector<128x128xbf16>, vector<16x128xf32> -> vector<16x128xf32>
    %c0_28 = arith.constant 0 : index
    %c0_29 = arith.constant 0 : index
    %64 = vector.load %arg6[%c0_28, %c0_29] : memref<1x128xf32, #tpu.memory_space<vmem>>, vector<1x128xf32>
    %65 = vector.broadcast %64 : vector<1x128xf32> to vector<16x128xf32>
    %66 = arith.addf %63, %65 : vector<16x128xf32>
    %67 = arith.truncf %66 : vector<16x128xf32> to vector<16x128xbf16>
    %c0_30 = arith.constant 0 : index
    %c0_31 = arith.constant 0 : index
    %68 = vector.load %arg7[%c0_30, %c0_31] : memref<16x128xbf16, #tpu.memory_space<vmem>>, vector<16x128xbf16>
    tpu.vector_store %arg7[%c0_30, %c0_31], %67 {strides = array<i32>} : memref<16x128xbf16, #tpu.memory_space<vmem>>, vector<16x128xbf16>,
    return
  }
  func.func @transform_0(%arg0: i32) -> (i32, i32) {
    %c0_i32 = arith.constant 0 : i32
    %c0_i32_0 = arith.constant 0 : i32
    return %arg0, %c0_i32 : i32, i32
  }
  func.func @transform_1(%arg0: i32) -> (i32, i32) {
    %c0_i32 = arith.constant 0 : i32
    %c0_i32_0 = arith.constant 0 : i32
    %c0_i32_1 = arith.constant 0 : i32
    return %c0_i32, %c0_i32_0 : i32, i32
  }
  func.func @transform_2(%arg0: i32) -> (i32, i32) {
    %c0_i32 = arith.constant 0 : i32
    %c0_i32_0 = arith.constant 0 : i32
    %c0_i32_1 = arith.constant 0 : i32
    return %c0_i32, %c0_i32_0 : i32, i32
  }
  func.func @transform_3(%arg0: i32) -> (i32, i32) {
    %c0_i32 = arith.constant 0 : i32
    %c0_i32_0 = arith.constant 0 : i32
    %c0_i32_1 = arith.constant 0 : i32
    return %c0_i32, %c0_i32_0 : i32, i32
  }
  func.func @transform_4(%arg0: i32) -> (i32, i32) {
    %c0_i32 = arith.constant 0 : i32
    %c0_i32_0 = arith.constant 0 : i32
    %c0_i32_1 = arith.constant 0 : i32
    return %c0_i32, %c0_i32_0 : i32, i32
  }
  func.func @transform_5(%arg0: i32) -> (i32, i32) {
    %c0_i32 = arith.constant 0 : i32
    %c0_i32_0 = arith.constant 0 : i32
    %c0_i32_1 = arith.constant 0 : i32
    return %c0_i32, %c0_i32_0 : i32, i32
  }
  func.func @transform_6(%arg0: i32) -> (i32, i32) {
    %c0_i32 = arith.constant 0 : i32
    %c0_i32_0 = arith.constant 0 : i32
    return %arg0, %c0_i32 : i32, i32
  }
}

</mosaic_0001>

<llo_original>
// kernel: tpu_custom_call.1
$region0: #{tpu_custom_call.1}
  #allocation0 [shape = 'u32[]', space=smem, size = 0x4, offset = 0x4, fixed_abs, tag = 'smem constant byte address 0x4 - core index']
  #allocation1 [shape = 'u32[144,128]{1,0:T(1,128)}', space=vmem, size = 0x12000, scoped, tag = 'internal scratch']
  %s0 = inlined_call_operand.hbm [shape: f32[16,128], index: 0, kind: input, shape index: {}]
  %s1 = inlined_call_operand.hbm [shape: bf16[128,128], index: 1, kind: input, shape index: {}]
  %s2 = inlined_call_operand.hbm [shape: bf16[128,128], index: 2, kind: input, shape index: {}]
  %s3 = inlined_call_operand.hbm [shape: bf16[128,128], index: 3, kind: input, shape index: {}]
  %s4 = inlined_call_operand.vmem [shape: f32[8,128], index: 4, kind: input, shape index: {}]
  %s5 = inlined_call_operand.vmem [shape: f32[1,128], index: 5, kind: input, shape index: {}]
  %s6 = inlined_call_operand.hbm [shape: bf16[16,128], index: 6, kind: output, shape index: {}]
  %s7 = sld [smem:[#allocation0]]
  $region50: #{tpu_custom_call.1} parent=0
    _
  %s9 = ssub.s32 1, %s7
  %s10 = scalar_select 0, %s9, %s7
  $region1: #{tpu_custom_call.1} parent=0
    #allocation2 [shape = 'u8[8192]{0}', space=vmem, size = 0x2000, scoped, tag = 'input window, operand 0, single buffered']
    #allocation3 [shape = 's32[1]{0}', space=sflag, size = 0x4, scoped, tag = 'scoped memory for tpu_custom_call.1']
    #allocation4 [shape = 's32[1]{0}', space=sflag, size = 0x4, scoped, tag = 'scoped memory for tpu_custom_call.1']
    #allocation5 [shape = 'u8[32768]{0}', space=vmem, size = 0x8000, scoped, tag = 'input window, operand 1, single buffered']
    #allocation6 [shape = 's32[1]{0}', space=sflag, size = 0x4, scoped, tag = 'scoped memory for tpu_custom_call.1']
    #allocation7 [shape = 'u8[32768]{0}', space=vmem, size = 0x8000, scoped, tag = 'input window, operand 2, single buffered']
    #allocation8 [shape = 'u8[32768]{0}', space=vmem, size = 0x8000, scoped, tag = 'input window, operand 3, single buffered']
    #allocation9 [shape = 's32[1]{0}', space=sflag, size = 0x4, scoped, tag = 'scoped memory for tpu_custom_call.1']
    #allocation10 [shape = 'u8[4096]{0}', space=vmem, size = 0x1000, scoped, tag = 'output window, operand 0, single buffered']
    %11 = vsyncpa [#allocation3], 0
    %12 = vsyncpa [#allocation6], 0
    %13 = vsyncpa [#allocation9], 0
    %14 = vsyncpa [#allocation4], 0
    // Predicated region
    $region2: #{tpu_custom_call.1} parent=1 // pred_check
      _
    $region3: #{tpu_custom_call.1} parent=1 // pred_check_branch
      %16 = sbr.rel (0) target = $region5
    $region4: #{tpu_custom_call.1} parent=1 // pred_region
      %s18 = ssub.s32 256, 256
      %19 = vsyncadd [#allocation3], %s18
      %s20 = sshll.u32 [#allocation2], 4
      %s21 = int_to_ptr.vmem [resolvable:$true] %s20
      %26 = dma.hbm_to_vmem [thread:$0]  %s0, 256, %s21, [#allocation3], 128, 128, 8
    $region5: #{tpu_custom_call.1} parent=1 // pred_fallthru
      _
    // Predicated region
    $region6: #{tpu_custom_call.1} parent=1 // pred_check
      _
    $region7: #{tpu_custom_call.1} parent=1 // pred_check_branch
      %28 = sbr.rel (0) target = $region9
    $region8: #{tpu_custom_call.1} parent=1 // pred_region
      %s30 = ssub.s32 1024, 1024
      %31 = vsyncadd [#allocation6], %s30
      %s32 = sshll.u32 [#allocation5], 4
      %s33 = int_to_ptr.vmem [resolvable:$true] %s32
      %38 = dma.hbm_to_vmem [thread:$0]  %s1, 1024, %s33, [#allocation6], 64, 64, 4
    $region9: #{tpu_custom_call.1} parent=1 // pred_fallthru
      _
    // Predicated region
    $region10: #{tpu_custom_call.1} parent=1 // pred_check
      _
    $region11: #{tpu_custom_call.1} parent=1 // pred_check_branch
      %40 = sbr.rel (0) target = $region13
    $region12: #{tpu_custom_call.1} parent=1 // pred_region
      %s42 = ssub.s32 1024, 1024
      %43 = vsyncadd [#allocation6], %s42
      %s44 = sshll.u32 [#allocation7], 4
      %s45 = int_to_ptr.vmem [resolvable:$true] %s44
      %50 = dma.hbm_to_vmem [thread:$0]  %s2, 1024, %s45, [#allocation6], 64, 64, 4
    $region13: #{tpu_custom_call.1} parent=1 // pred_fallthru
      _
    // Predicated region
    $region14: #{tpu_custom_call.1} parent=1 // pred_check
      _
    $region15: #{tpu_custom_call.1} parent=1 // pred_check_branch
      %52 = sbr.rel (0) target = $region17
    $region16: #{tpu_custom_call.1} parent=1 // pred_region
      %s54 = ssub.s32 1024, 1024
      %55 = vsyncadd [#allocation9], %s54
      %s56 = sshll.u32 [#allocation8], 4
      %s57 = int_to_ptr.vmem [resolvable:$true] %s56
      %62 = dma.hbm_to_vmem [thread:$0]  %s3, 1024, %s57, [#allocation9], 64, 64, 4
    $region17: #{tpu_custom_call.1} parent=1 // pred_fallthru
      _
    // Predicated region
    $region18: #{tpu_custom_call.1} parent=1 // pred_check
      _
    $region19: #{tpu_custom_call.1} parent=1 // pred_check_branch
      %64 = sbr.rel (0) target = $region21
    $region20: #{tpu_custom_call.1} parent=1 // pred_region
      _
    $region21: #{tpu_custom_call.1} parent=1 // pred_fallthru
      _
    // Predicated region
    $region22: #{tpu_custom_call.1} parent=1 // pred_check
      _
    $region23: #{tpu_custom_call.1} parent=1 // pred_check_branch
      %66 = sbr.rel (0) target = $region25
    $region24: #{tpu_custom_call.1} parent=1 // pred_region
      _
    $region25: #{tpu_custom_call.1} parent=1 // pred_fallthru
      _
    // Predicated region
    $region26: #{tpu_custom_call.1} parent=1 // pred_check
      _
    $region27: #{tpu_custom_call.1} parent=1 // pred_check_branch
      %68 = sbr.rel (0) target = $region29
    $region28: #{tpu_custom_call.1} parent=1 // pred_region
      %69 = dma.done [#allocation3], 256
    $region29: #{tpu_custom_call.1} parent=1 // pred_fallthru
      _
    // Predicated region
    $region30: #{tpu_custom_call.1} parent=1 // pred_check
      _
    $region31: #{tpu_custom_call.1} parent=1 // pred_check_branch
      %71 = sbr.rel (0) target = $region33
    $region32: #{tpu_custom_call.1} parent=1 // pred_region
      %72 = dma.done [#allocation6], 1024
    $region33: #{tpu_custom_call.1} parent=1 // pred_fallthru
      _
    // Predicated region
    $region34: #{tpu_custom_call.1} parent=1 // pred_check
      _
    $region35: #{tpu_custom_call.1} parent=1 // pred_check_branch
      %74 = sbr.rel (0) target = $region37
    $region36: #{tpu_custom_call.1} parent=1 // pred_region
      %75 = dma.done [#allocation6], 1024
    $region37: #{tpu_custom_call.1} parent=1 // pred_fallthru
      _
    // Predicated region
    $region38: #{tpu_custom_call.1} parent=1 // pred_check
      _
    $region39: #{tpu_custom_call.1} parent=1 // pred_check_branch
      %77 = sbr.rel (0) target = $region41
    $region40: #{tpu_custom_call.1} parent=1 // pred_region
      %78 = dma.done [#allocation9], 1024
    $region41: #{tpu_custom_call.1} parent=1 // pred_fallthru
      _
    %v80 = vld [vmem:[#allocation2] sm:$0xff]
    %v81 = vld [vmem:[#allocation2 + $0x8] sm:$0xff]
    %v82 = vpack.c.bf16 %v81, %v80
    %v83 = vld [vmem:[%s4] sm:$0x1]
    %v84 = vld [vmem:[%s4 + $0x1] sm:$0x1]
    %v85 = vld [vmem:[%s4 + $0x2] sm:$0x1]
    %v86 = vld [vmem:[%s4 + $0x3] sm:$0x1]
    %v87 = vld [vmem:[%s4 + $0x4] sm:$0x1]
    %v88 = vld [vmem:[%s4 + $0x5] sm:$0x1]
    %v89 = vld [vmem:[#allocation5] sm:$0xf]
    %v90 = vld [vmem:[#allocation5 + $0x4] sm:$0xf]
    %v91 = vld [vmem:[#allocation5 + $0x8] sm:$0xf]
    %v92 = vld [vmem:[#allocation5 + $0xc] sm:$0xf]
    %v93 = vld [vmem:[#allocation5 + $0x10] sm:$0xf]
    %v94 = vld [vmem:[#allocation5 + $0x14] sm:$0xf]
    %v95 = vld [vmem:[#allocation5 + $0x18] sm:$0xf]
    %v96 = vld [vmem:[#allocation5 + $0x1c] sm:$0xf]
    %v97 = vld [vmem:[#allocation5 + $0x20] sm:$0xf]
    %v98 = vld [vmem:[#allocation5 + $0x24] sm:$0xf]
    %v99 = vld [vmem:[#allocation5 + $0x28] sm:$0xf]
    %v100 = vld [vmem:[#allocation5 + $0x2c] sm:$0xf]
    %v101 = vld [vmem:[#allocation5 + $0x30] sm:$0xf]
    %v102 = vld [vmem:[#allocation5 + $0x34] sm:$0xf]
    %v103 = vld [vmem:[#allocation5 + $0x38] sm:$0xf]
    %v104 = vld [vmem:[#allocation5 + $0x3c] sm:$0xf]
    %v105 = vlaneseq
    %v106 = vshrl.u32 %v105, 7
    %v107 = vsub.s32 0, %v106
    %v108 = vrot.slane %v83, %v107
    %v125 = vunpack.c.l.b16 %v89
    %v126 = vunpack.c.l.b16 %v90
    %v127 = vunpack.c.l.b16 %v91
    %v128 = vunpack.c.l.b16 %v92
    %v129 = vunpack.c.l.b16 %v93
    %v130 = vunpack.c.l.b16 %v94
    %v131 = vunpack.c.l.b16 %v95
    %v132 = vunpack.c.l.b16 %v96
    %v133 = vunpack.c.l.b16 %v97
    %v134 = vunpack.c.l.b16 %v98
    %v135 = vunpack.c.l.b16 %v99
    %v136 = vunpack.c.l.b16 %v100
    %v137 = vunpack.c.l.b16 %v101
    %v138 = vunpack.c.l.b16 %v102
    %v139 = vunpack.c.l.b16 %v103
    %v140 = vunpack.c.l.b16 %v104
    %v141 = vpack.c.b16 %v126, %v125
    %v142 = vpack.c.b16 %v128, %v127
    %v143 = vpack.c.b16 %v130, %v129
    %v144 = vpack.c.b16 %v132, %v131
    %v145 = vpack.c.b16 %v134, %v133
    %v146 = vpack.c.b16 %v136, %v135
    %v147 = vpack.c.b16 %v138, %v137
    %v148 = vpack.c.b16 %v140, %v139
    %157 = vmatprep.subr.bf16.mxu0 0
    %158 = vmatpush1.bf16.msra.mxu0 %v141
    %159 = vmatprep.subr.bf16.mxu0 0
    %160 = vmatpush1.bf16.msra.mxu0 %v142
    %161 = vmatprep.subr.bf16.mxu0 0
    %162 = vmatpush1.bf16.msra.mxu0 %v143
    %163 = vmatprep.subr.bf16.mxu0 0
    %164 = vmatpush1.bf16.msra.mxu0 %v144
    %165 = vmatprep.subr.bf16.mxu0 0
    %166 = vmatpush1.bf16.msra.mxu0 %v145
    %167 = vmatprep.subr.bf16.mxu0 0
    %168 = vmatpush1.bf16.msra.mxu0 %v146
    %169 = vmatprep.subr.bf16.mxu0 0
    %170 = vmatpush1.bf16.msra.mxu0 %v147
    %171 = vmatprep.subr.bf16.mxu0 0
    %172 = vmatpush1.bf16.msra.mxu0 %v148
    %173 = vmatprep.subr.bf16.mxu0 0
    %174 = vmatpush1.bf16.msra.mxu0 0
    %175 = vmatprep.subr.bf16.mxu0 0
    %176 = vmatpush1.bf16.msra.mxu0 0
    %177 = vmatprep.subr.bf16.mxu0 0
    %178 = vmatpush1.bf16.msra.mxu0 0
    %179 = vmatprep.subr.bf16.mxu0 0
    %180 = vmatpush1.bf16.msra.mxu0 0
    %181 = vmatprep.subr.bf16.mxu0 0
    %182 = vmatpush1.bf16.msra.mxu0 0
    %183 = vmatprep.subr.bf16.mxu0 0
    %184 = vmatpush1.bf16.msra.mxu0 0
    %185 = vmatprep.subr.bf16.mxu0 0
    %186 = vmatpush1.bf16.msra.mxu0 0
    %187 = vmatprep.subr.bf16.mxu0 0
    %188 = vmatpush1.bf16.msra.mxu0 0
    %189 = vmatprep.mubr.bf16.mxu0 0
    %190 = vmatmul.mubr.bf16.gmra.mrb[0].mxu0 %v82
    %v191 = vpop.f32.mrb[0].mxu0
    %v192 = vadd.f32 %v108, %v191
    %v193 = vpop.f32.mrb[0].mxu0
    %v194 = vpop.f32.mrb[0].mxu0
    %v195 = vadd.f32 %v108, %v194
    %v196 = vpop.f32.mrb[0].mxu0
    %197 = vdwg.mxu0
    %v198 = vmax.f32 %v192, 0.0
    %v199 = vmax.f32 %v195, 0.0
    %200 = vadd.xlane.f32.xlu0 %v198
    %v201 = vpop.xlane.xlu0 %200
    %202 = vadd.xlane.f32.xlu0 %v199
    %v203 = vpop.xlane.xlu0 %202
    %v204 = vrcp.pop 128.0
    %v205 = vmul.f32 %v201, %v204
    %v206 = vmul.f32 %v203, %v204
    %v207 = vsub.f32 %v198, %v205
    %v208 = vsub.f32 %v199, %v206
    %v209 = vmul.f32 %v207, %v207
    %v210 = vmul.f32 %v208, %v208
    %211 = vadd.xlane.f32.xlu0 %v209
    %v212 = vpop.xlane.xlu0 %211
    %213 = vadd.xlane.f32.xlu0 %v210
    %v214 = vpop.xlane.xlu0 %213
    %v215 = vmul.f32 %v212, %v204
    %v216 = vmul.f32 %v214, %v204
    %v217 = vadd.f32 %v215, 1e-05
    %v218 = vadd.f32 %v216, 1e-05
    %v219 = vrsqrt.pop %v217
    %v220 = vrsqrt.pop %v218
    %v221 = vmul.f32 %v207, %v219
    %v222 = vmul.f32 %v208, %v220
    %v223 = vlaneseq
    %v224 = vshrl.u32 %v223, 7
    %v225 = vsub.s32 0, %v224
    %v226 = vrot.slane %v84, %v225
    %v227 = vmul.f32 %v221, %v226
    %v228 = vmul.f32 %v222, %v226
    %v229 = vlaneseq
    %v230 = vshrl.u32 %v229, 7
    %v231 = vsub.s32 0, %v230
    %v232 = vrot.slane %v85, %v231
    %v233 = vadd.f32 %v227, %v232
    %v234 = vadd.f32 %v228, %v232
    %v235 = vpack.c.bf16 %v234, %v233
    %v236 = vld [vmem:[#allocation7] sm:$0xf]
    %v237 = vld [vmem:[#allocation7 + $0x4] sm:$0xf]
    %v238 = vld [vmem:[#allocation7 + $0x8] sm:$0xf]
    %v239 = vld [vmem:[#allocation7 + $0xc] sm:$0xf]
    %v240 = vld [vmem:[#allocation7 + $0x10] sm:$0xf]
    %v241 = vld [vmem:[#allocation7 + $0x14] sm:$0xf]
    %v242 = vld [vmem:[#allocation7 + $0x18] sm:$0xf]
    %v243 = vld [vmem:[#allocation7 + $0x1c] sm:$0xf]
    %v244 = vld [vmem:[#allocation7 + $0x20] sm:$0xf]
    %v245 = vld [vmem:[#allocation7 + $0x24] sm:$0xf]
    %v246 = vld [vmem:[#allocation7 + $0x28] sm:$0xf]
    %v247 = vld [vmem:[#allocation7 + $0x2c] sm:$0xf]
    %v248 = vld [vmem:[#allocation7 + $0x30] sm:$0xf]
    %v249 = vld [vmem:[#allocation7 + $0x34] sm:$0xf]
    %v250 = vld [vmem:[#allocation7 + $0x38] sm:$0xf]
    %v251 = vld [vmem:[#allocation7 + $0x3c] sm:$0xf]
    %v252 = vlaneseq
    %v253 = vshrl.u32 %v252, 7
    %v254 = vsub.s32 0, %v253
    %v255 = vrot.slane %v86, %v254
    %v272 = vunpack.c.l.b16 %v236
    %v273 = vunpack.c.l.b16 %v237
    %v274 = vunpack.c.l.b16 %v238
    %v275 = vunpack.c.l.b16 %v239
    %v276 = vunpack.c.l.b16 %v240
    %v277 = vunpack.c.l.b16 %v241
    %v278 = vunpack.c.l.b16 %v242
    %v279 = vunpack.c.l.b16 %v243
    %v280 = vunpack.c.l.b16 %v244
    %v281 = vunpack.c.l.b16 %v245
    %v282 = vunpack.c.l.b16 %v246
    %v283 = vunpack.c.l.b16 %v247
    %v284 = vunpack.c.l.b16 %v248
    %v285 = vunpack.c.l.b16 %v249
    %v286 = vunpack.c.l.b16 %v250
    %v287 = vunpack.c.l.b16 %v251
    %v288 = vpack.c.b16 %v273, %v272
    %v289 = vpack.c.b16 %v275, %v274
    %v290 = vpack.c.b16 %v277, %v276
    %v291 = vpack.c.b16 %v279, %v278
    %v292 = vpack.c.b16 %v281, %v280
    %v293 = vpack.c.b16 %v283, %v282
    %v294 = vpack.c.b16 %v285, %v284
    %v295 = vpack.c.b16 %v287, %v286
    %304 = vmatprep.subr.bf16.mxu0 0
    %305 = vmatpush1.bf16.msra.mxu0 %v288
    %306 = vmatprep.subr.bf16.mxu0 0
    %307 = vmatpush1.bf16.msra.mxu0 %v289
    %308 = vmatprep.subr.bf16.mxu0 0
    %309 = vmatpush1.bf16.msra.mxu0 %v290
    %310 = vmatprep.subr.bf16.mxu0 0
    %311 = vmatpush1.bf16.msra.mxu0 %v291
    %312 = vmatprep.subr.bf16.mxu0 0
    %313 = vmatpush1.bf16.msra.mxu0 %v292
    %314 = vmatprep.subr.bf16.mxu0 0
    %315 = vmatpush1.bf16.msra.mxu0 %v293
    %316 = vmatprep.subr.bf16.mxu0 0
    %317 = vmatpush1.bf16.msra.mxu0 %v294
    %318 = vmatprep.subr.bf16.mxu0 0
    %319 = vmatpush1.bf16.msra.mxu0 %v295
    %320 = vmatprep.subr.bf16.mxu0 0
    %321 = vmatpush1.bf16.msra.mxu0 0
    %322 = vmatprep.subr.bf16.mxu0 0
    %323 = vmatpush1.bf16.msra.mxu0 0
    %324 = vmatprep.subr.bf16.mxu0 0
    %325 = vmatpush1.bf16.msra.mxu0 0
    %326 = vmatprep.subr.bf16.mxu0 0
    %327 = vmatpush1.bf16.msra.mxu0 0
    %328 = vmatprep.subr.bf16.mxu0 0
    %329 = vmatpush1.bf16.msra.mxu0 0
    %330 = vmatprep.subr.bf16.mxu0 0
    %331 = vmatpush1.bf16.msra.mxu0 0
    %332 = vmatprep.subr.bf16.mxu0 0
    %333 = vmatpush1.bf16.msra.mxu0 0
    %334 = vmatprep.subr.bf16.mxu0 0
    %335 = vmatpush1.bf16.msra.mxu0 0
    %336 = vmatprep.mubr.bf16.mxu0 0
    %337 = vmatmul.mubr.bf16.gmra.mrb[0].mxu0 %v235
    %v338 = vpop.f32.mrb[0].mxu0
    %v339 = vadd.f32 %v255, %v338
    %v340 = vpop.f32.mrb[0].mxu0
    %v341 = vpop.f32.mrb[0].mxu0
    %v342 = vadd.f32 %v255, %v341
    %v343 = vpop.f32.mrb[0].mxu0
    %344 = vdwg.mxu0
    %v345 = vmax.f32 %v339, 0.0
    %v346 = vmax.f32 %v342, 0.0
    %347 = vadd.xlane.f32.xlu0 %v345
    %v348 = vpop.xlane.xlu0 %347
    %349 = vadd.xlane.f32.xlu0 %v346
    %v350 = vpop.xlane.xlu0 %349
    %v351 = vmul.f32 %v348, %v204
    %v352 = vmul.f32 %v350, %v204
    %v353 = vsub.f32 %v345, %v351
    %v354 = vsub.f32 %v346, %v352
    %v355 = vmul.f32 %v353, %v353
    %v356 = vmul.f32 %v354, %v354
    %357 = vadd.xlane.f32.xlu0 %v355
    %v358 = vpop.xlane.xlu0 %357
    %359 = vadd.xlane.f32.xlu0 %v356
    %v360 = vpop.xlane.xlu0 %359
    %v361 = vmul.f32 %v358, %v204
    %v362 = vmul.f32 %v360, %v204
    %v363 = vadd.f32 %v361, 1e-05
    %v364 = vadd.f32 %v362, 1e-05
    %v365 = vrsqrt.pop %v363
    %v366 = vrsqrt.pop %v364
    %v367 = vmul.f32 %v353, %v365
    %v368 = vmul.f32 %v354, %v366
    %v369 = vlaneseq
    %v370 = vshrl.u32 %v369, 7
    %v371 = vsub.s32 0, %v370
    %v372 = vrot.slane %v87, %v371
    %v373 = vmul.f32 %v367, %v372
    %v374 = vmul.f32 %v368, %v372
    %v375 = vlaneseq
    %v376 = vshrl.u32 %v375, 7
    %v377 = vsub.s32 0, %v376
    %v378 = vrot.slane %v88, %v377
    %v379 = vadd.f32 %v373, %v378
    %v380 = vadd.f32 %v374, %v378
    %v381 = vpack.c.bf16 %v380, %v379
    %v382 = vld [vmem:[#allocation8] sm:$0xf]
    %v383 = vld [vmem:[#allocation8 + $0x4] sm:$0xf]
    %v384 = vld [vmem:[#allocation8 + $0x8] sm:$0xf]
    %v385 = vld [vmem:[#allocation8 + $0xc] sm:$0xf]
    %v386 = vld [vmem:[#allocation8 + $0x10] sm:$0xf]
    %v387 = vld [vmem:[#allocation8 + $0x14] sm:$0xf]
    %v388 = vld [vmem:[#allocation8 + $0x18] sm:$0xf]
    %v389 = vld [vmem:[#allocation8 + $0x1c] sm:$0xf]
    %v390 = vld [vmem:[#allocation8 + $0x20] sm:$0xf]
    %v391 = vld [vmem:[#allocation8 + $0x24] sm:$0xf]
    %v392 = vld [vmem:[#allocation8 + $0x28] sm:$0xf]
    %v393 = vld [vmem:[#allocation8 + $0x2c] sm:$0xf]
    %v394 = vld [vmem:[#allocation8 + $0x30] sm:$0xf]
    %v395 = vld [vmem:[#allocation8 + $0x34] sm:$0xf]
    %v396 = vld [vmem:[#allocation8 + $0x38] sm:$0xf]
    %v397 = vld [vmem:[#allocation8 + $0x3c] sm:$0xf]
    %v398 = vld [vmem:[%s5] sm:$0x1]
    %v400 = vlaneseq
    %v401 = vshrl.u32 %v400, 7
    %v402 = vsub.s32 0, %v401
    %v403 = vrot.slane %v398, %v402
    %v421 = vunpack.c.l.b16 %v382
    %v422 = vunpack.c.l.b16 %v383
    %v423 = vunpack.c.l.b16 %v384
    %v424 = vunpack.c.l.b16 %v385
    %v425 = vunpack.c.l.b16 %v386
    %v426 = vunpack.c.l.b16 %v387
    %v427 = vunpack.c.l.b16 %v388
    %v428 = vunpack.c.l.b16 %v389
    %v429 = vunpack.c.l.b16 %v390
    %v430 = vunpack.c.l.b16 %v391
    %v431 = vunpack.c.l.b16 %v392
    %v432 = vunpack.c.l.b16 %v393
    %v433 = vunpack.c.l.b16 %v394
    %v434 = vunpack.c.l.b16 %v395
    %v435 = vunpack.c.l.b16 %v396
    %v436 = vunpack.c.l.b16 %v397
    %v437 = vpack.c.b16 %v422, %v421
    %v438 = vpack.c.b16 %v424, %v423
    %v439 = vpack.c.b16 %v426, %v425
    %v440 = vpack.c.b16 %v428, %v427
    %v441 = vpack.c.b16 %v430, %v429
    %v442 = vpack.c.b16 %v432, %v431
    %v443 = vpack.c.b16 %v434, %v433
    %v444 = vpack.c.b16 %v436, %v435
    %453 = vmatprep.subr.bf16.mxu0 0
    %454 = vmatpush1.bf16.msra.mxu0 %v437
    %455 = vmatprep.subr.bf16.mxu0 0
    %456 = vmatpush1.bf16.msra.mxu0 %v438
    %457 = vmatprep.subr.bf16.mxu0 0
    %458 = vmatpush1.bf16.msra.mxu0 %v439
    %459 = vmatprep.subr.bf16.mxu0 0
    %460 = vmatpush1.bf16.msra.mxu0 %v440
    %461 = vmatprep.subr.bf16.mxu0 0
    %462 = vmatpush1.bf16.msra.mxu0 %v441
    %463 = vmatprep.subr.bf16.mxu0 0
    %464 = vmatpush1.bf16.msra.mxu0 %v442
    %465 = vmatprep.subr.bf16.mxu0 0
    %466 = vmatpush1.bf16.msra.mxu0 %v443
    %467 = vmatprep.subr.bf16.mxu0 0
    %468 = vmatpush1.bf16.msra.mxu0 %v444
    %469 = vmatprep.subr.bf16.mxu0 0
    %470 = vmatpush1.bf16.msra.mxu0 0
    %471 = vmatprep.subr.bf16.mxu0 0
    %472 = vmatpush1.bf16.msra.mxu0 0
    %473 = vmatprep.subr.bf16.mxu0 0
    %474 = vmatpush1.bf16.msra.mxu0 0
    %475 = vmatprep.subr.bf16.mxu0 0
    %476 = vmatpush1.bf16.msra.mxu0 0
    %477 = vmatprep.subr.bf16.mxu0 0
    %478 = vmatpush1.bf16.msra.mxu0 0
    %479 = vmatprep.subr.bf16.mxu0 0
    %480 = vmatpush1.bf16.msra.mxu0 0
    %481 = vmatprep.subr.bf16.mxu0 0
    %482 = vmatpush1.bf16.msra.mxu0 0
    %483 = vmatprep.subr.bf16.mxu0 0
    %484 = vmatpush1.bf16.msra.mxu0 0
    %485 = vmatprep.mubr.bf16.mxu0 0
    %486 = vmatmul.mubr.bf16.gmra.mrb[0].mxu0 %v381
    %v487 = vpop.f32.mrb[0].mxu0
    %v488 = vadd.f32 %v403, %v487
    %v489 = vpop.f32.mrb[0].mxu0
    %v490 = vpop.f32.mrb[0].mxu0
    %v491 = vadd.f32 %v403, %v490
    %v492 = vpop.f32.mrb[0].mxu0
    %493 = vdwg.mxu0
    %v494 = vpack.c.bf16 %v491, %v488
    %v496 = vunpack.c.l.b16 %v494
    %v497 = vunpack.c.h.b16 %v494
    %v498 = vpack.c.b16 %v496, %v496
    %v499 = vpack.c.b16 %v497, %v497
    %502 = vst [vmem:[#allocation10] sm:$0xf] %v498
    %503 = vst [vmem:[#allocation10 + $0x4] sm:$0xf] %v499
    // Predicated region
    $region42: #{tpu_custom_call.1} parent=1 // pred_check
      _
    $region43: #{tpu_custom_call.1} parent=1 // pred_check_branch
      %505 = sbr.rel (0) target = $region45
    $region44: #{tpu_custom_call.1} parent=1 // pred_region
      %s507 = ssub.s32 128, 128
      %508 = vsyncadd [#allocation4], %s507
      %s509 = sshll.u32 [#allocation10], 4
      %s510 = int_to_ptr.vmem [resolvable:$true] %s509
      %515 = dma.vmem_to_hbm [thread:$0]  %s510, 128, %s6, [#allocation4], 64, 64, 4
    $region45: #{tpu_custom_call.1} parent=1 // pred_fallthru
      _
    // Predicated region
    $region46: #{tpu_custom_call.1} parent=1 // pred_check
      _
    $region47: #{tpu_custom_call.1} parent=1 // pred_check_branch
      %517 = sbr.rel (0) target = $region49
    $region48: #{tpu_custom_call.1} parent=1 // pred_region
      %518 = dma.done [#allocation4], 128
    $region49: #{tpu_custom_call.1} parent=1 // pred_fallthru
      _
    %519 = vsyncpa [#allocation3], 1
    %520 = vsyncpa [#allocation6], 1
    %521 = vsyncpa [#allocation9], 1
    %522 = vsyncpa [#allocation4], 1

</llo_original>
